<compile_context>
chip_gen: v7x
topology: tpu7x:2x2x1
jax: 0.10.0
libtpu: 0.0.40
codegen_flags: <defaults>
</compile_context>

<pallas_src>
import functools

import jax
import jax.numpy as jnp
from jax.experimental import pallas as pl
from jax.experimental.pallas import tpu as pltpu


_OUT_LANES = 128


def _round_up(x, m):
    return (x + m - 1) // m * m


def _hope_loss_kernel(pred_ref, lab_ref, trn_ref, out_ref,
                      acc_ce, acc_pos, acc_unl,
                      *, n_valid, blocks_per_split):
    i = pl.program_id(1)

    @pl.when(i == 0)
    def _init():
        acc_ce[...] = jnp.zeros_like(acc_ce)
        acc_pos[...] = jnp.zeros_like(acc_pos)
        acc_unl[...] = jnp.zeros_like(acc_unl)

    x = pred_ref[...].astype(jnp.float32)      # (C, TN): classes -> sublanes
    labels = lab_ref[...]                      # (1, TN) int32
    trn = trn_ref[...]                         # (1, TN) int32
    _, tn = x.shape

    # validity mask for rows added by padding N up to the tiled extent
    block = pl.program_id(0) * blocks_per_split + i
    lane = jax.lax.broadcasted_iota(jnp.int32, (1, tn), 1)
    valid = ((block * tn + lane) < n_valid).astype(jnp.float32)   # (1, TN)

    # numerically stable log-softmax over the (short) class / sublane axis;
    # all results are lane-dense (1, TN) vectors.
    m = jnp.max(x, axis=0, keepdims=True)
    lse = m + jnp.log(jnp.sum(jnp.exp(x - m), axis=0, keepdims=True))

    cls = jax.lax.broadcasted_iota(jnp.int32, x.shape, 0)          # (C, TN)
    sel_lab = jnp.sum(jnp.where(cls == labels, x, 0.0), axis=0, keepdims=True)
    sel_trn = jnp.sum(jnp.where(cls == trn, x, 0.0), axis=0, keepdims=True)

    pos = (labels != 0).astype(jnp.float32) * valid                # (1, TN)
    unl = (labels == 0).astype(jnp.float32) * valid                # (1, TN)

    ce = lse - sel_lab          # per-node cross entropy at the true label
    unl_dot = sel_trn - lse     # log_softmax at trn label (one-hot marginal dot)

    # element-wise accumulation only; cross-lane reduction deferred to finalize
    acc_ce[...] += ce * pos
    acc_pos[...] += pos
    acc_unl[...] += unl_dot * unl

    @pl.when(i == blocks_per_split - 1)
    def _finalize():
        s_ce = jnp.sum(acc_ce[...])
        s_pos = jnp.sum(acc_pos[...])
        s_unl = jnp.sum(acc_unl[...])
        out_lane = jax.lax.broadcasted_iota(jnp.int32, (8, _OUT_LANES), 1)
        row = jnp.where(out_lane == 0, s_ce,
              jnp.where(out_lane == 1, s_pos,
              jnp.where(out_lane == 2, s_unl, 0.0)))
        out_ref[...] = row


def hope_loss(predictions, labels, trn_labels, *,
              tile_n=2048, num_splits=2, vmem_limit_bytes=None):
    """predictions: (N, C) float; labels, trn_labels: (N,) int.

    marginals are implied: one_hot(trn_labels, C) (to_initial_priors path).
    """
    n, c = predictions.shape

    # node-tile: multiple of 128 lanes, no larger than what N needs per split
    tile_eff = max(128, min(_round_up(tile_n, 128),
                            _round_up(pl.cdiv(n, num_splits), 128)))
    blocks_per_split = pl.cdiv(n, num_splits * tile_eff)
    n_pad = num_splits * blocks_per_split * tile_eff

    # lane-dense layout: nodes on the lane axis, classes on sublanes
    pred_t = jnp.pad(predictions, ((0, n_pad - n), (0, 0))).T            # (C, n_pad)
    lab_row = jnp.pad(labels.astype(jnp.int32), (0, n_pad - n)).reshape(1, n_pad)
    trn_row = jnp.pad(trn_labels.astype(jnp.int32), (0, n_pad - n)).reshape(1, n_pad)

    kernel = functools.partial(_hope_loss_kernel, n_valid=n,
                               blocks_per_split=blocks_per_split)
    node_map = lambda s, i: (0, s * blocks_per_split + i)

    partials = pl.pallas_call(
        kernel,
        out_shape=jax.ShapeDtypeStruct((num_splits * 8, _OUT_LANES), jnp.float32),
        grid_spec=pltpu.PrefetchScalarGridSpec(
            num_scalar_prefetch=0,
            grid=(num_splits, blocks_per_split),
            in_specs=[
                pl.BlockSpec((c, tile_eff), node_map),   # predictions (C, TN)
                pl.BlockSpec((1, tile_eff), node_map),   # labels      (1, TN)
                pl.BlockSpec((1, tile_eff), node_map),   # trn_labels  (1, TN)
            ],
            out_specs=pl.BlockSpec((8, _OUT_LANES), lambda s, i: (s, 0)),
            scratch_shapes=[pltpu.VMEM((1, tile_eff), jnp.float32)] * 3,
        ),
        compiler_params=pltpu.CompilerParams(
            dimension_semantics=("parallel", "arbitrary"),
            vmem_limit_bytes=vmem_limit_bytes),
    )(pred_t, lab_row, trn_row)

    # per-split partial sums -> final scalar loss (tiny JAX epilogue)
    sums = jnp.sum(partials.reshape(num_splits, 8, _OUT_LANES)[:, 0, :], axis=0)
    s_ce, s_pos, s_unl = sums[0], sums[1], sums[2]
    n_unl = jnp.float32(n) - s_pos
    r_hat_p = s_ce / s_pos
    r_hat_u = -s_unl / (n_unl * c)
    return r_hat_p + r_hat_u


def hope_loss_reference(predictions, labels, trn_labels):
    num_class = predictions.shape[1]
    marginals = jax.nn.one_hot(trn_labels, num_class, dtype=jnp.float32)
    logp = jax.nn.log_softmax(predictions.astype(jnp.float32), axis=1)
    ce = -jnp.take_along_axis(logp, labels[:, None].astype(jnp.int32), axis=1)[:, 0]
    pos = labels != 0
    unl = labels == 0
    r_p = jnp.sum(jnp.where(pos, ce, 0.0)) / jnp.sum(pos)
    r_u = -jnp.sum(jnp.where(unl[:, None], logp * marginals, 0.0)) / (
        jnp.sum(unl) * num_class)
    return r_p + r_u


if __name__ == "__main__":
    num_nodes = 16
    num_class = 4

    key = jax.random.PRNGKey(0)
    k_pred, k_lab, k_trn = jax.random.split(key, 3)

    predictions = jax.random.normal(k_pred, (num_nodes, num_class), jnp.float32)
    labels = jax.random.randint(k_lab, (num_nodes,), 0, num_class, jnp.int32)
    # guarantee both labeled (!=0) and unlabeled (==0) nodes exist
    labels = labels.at[0].set(0).at[1].set(1)

    # module parameter path: marginals = one_hot(trn_labels, C); the kernel
    # consumes trn_labels directly instead of the dense one-hot.
    trn_labels = jax.random.randint(k_trn, (num_nodes,), 0, num_class, jnp.int32)

    loss = hope_loss(predictions, labels, trn_labels)
    loss = jax.block_until_ready(loss)

    ref = hope_loss_reference(predictions, labels, trn_labels)
    assert jnp.allclose(loss, ref, atol=1e-5, rtol=1e-5), (loss, ref)

    print("KERNEL_OK")
</pallas_src>

<mosaic_0001>
module attributes {stable_mosaic.version = 11 : i64} {
  func.func @_hope_loss_kernel(%arg0: i32, %arg1: i32, %arg2: memref<4x128xf32, #tpu.memory_space<vmem>>, %arg3: memref<1x128xi32, #tpu.memory_space<vmem>>, %arg4: memref<1x128xi32, #tpu.memory_space<vmem>>, %arg5: memref<8x128xf32, #tpu.memory_space<vmem>>, %arg6: memref<1x128xf32, #tpu.memory_space<vmem>>, %arg7: memref<1x128xf32, #tpu.memory_space<vmem>>, %arg8: memref<1x128xf32, #tpu.memory_space<vmem>>) attributes {dimension_semantics = [#tpu.dimension_semantics<parallel>, #tpu.dimension_semantics<arbitrary>], iteration_bounds = array<i64: 2, 1>, scalar_prefetch = 0 : i64, scratch_operands = 3 : i64, tpu.core_type = #tpu.core_type<tc>, window_params = [{transform_indices = @transform_0, window_bounds = array<i64: 4, 128>}, {transform_indices = @transform_1, window_bounds = array<i64: 1, 128>}, {transform_indices = @transform_2, window_bounds = array<i64: 1, 128>}, {transform_indices = @transform_3, window_bounds = array<i64: 8, 128>}]} {
    %c0_i32 = arith.constant 0 : i32
    %0 = arith.cmpi eq, %arg1, %c0_i32 : i32
    %1 = arith.extui %0 : i1 to i32
    %c0_i32_0 = arith.constant 0 : i32
    %2 = arith.cmpi ne, %1, %c0_i32_0 : i32
    scf.if %2 {
      %cst_27 = arith.constant 0.000000e+00 : f32
      %64 = vector.broadcast %cst_27 : f32 to vector<1x128xf32>
      %c0_28 = arith.constant 0 : index
      %c0_29 = arith.constant 0 : index
      %65 = vector.load %arg6[%c0_28, %c0_29] : memref<1x128xf32, #tpu.memory_space<vmem>>, vector<1x128xf32>
      tpu.vector_store %arg6[%c0_28, %c0_29], %64 {strides = array<i32>} : memref<1x128xf32, #tpu.memory_space<vmem>>, vector<1x128xf32>,
      %cst_30 = arith.constant 0.000000e+00 : f32
      %66 = vector.broadcast %cst_30 : f32 to vector<1x128xf32>
      %c0_31 = arith.constant 0 : index
      %c0_32 = arith.constant 0 : index
      %67 = vector.load %arg7[%c0_31, %c0_32] : memref<1x128xf32, #tpu.memory_space<vmem>>, vector<1x128xf32>
      tpu.vector_store %arg7[%c0_31, %c0_32], %66 {strides = array<i32>} : memref<1x128xf32, #tpu.memory_space<vmem>>, vector<1x128xf32>,
      %cst_33 = arith.constant 0.000000e+00 : f32
      %68 = vector.broadcast %cst_33 : f32 to vector<1x128xf32>
      %c0_34 = arith.constant 0 : index
      %c0_35 = arith.constant 0 : index
      %69 = vector.load %arg8[%c0_34, %c0_35] : memref<1x128xf32, #tpu.memory_space<vmem>>, vector<1x128xf32>
      tpu.vector_store %arg8[%c0_34, %c0_35], %68 {strides = array<i32>} : memref<1x128xf32, #tpu.memory_space<vmem>>, vector<1x128xf32>,
    } else {
    }
    %c0 = arith.constant 0 : index
    %c0_1 = arith.constant 0 : index
    %3 = vector.load %arg2[%c0, %c0_1] : memref<4x128xf32, #tpu.memory_space<vmem>>, vector<4x128xf32>
    %c0_2 = arith.constant 0 : index
    %c0_3 = arith.constant 0 : index
    %4 = vector.load %arg3[%c0_2, %c0_3] : memref<1x128xi32, #tpu.memory_space<vmem>>, vector<1x128xi32>
    %c0_4 = arith.constant 0 : index
    %c0_5 = arith.constant 0 : index
    %5 = vector.load %arg4[%c0_4, %c0_5] : memref<1x128xi32, #tpu.memory_space<vmem>>, vector<1x128xi32>
    %c1_i32 = arith.constant 1 : i32
    %6 = arith.muli %arg0, %c1_i32 : i32
    %7 = arith.addi %6, %arg1 : i32
    %8 = tpu.iota {dimensions = array<i32: 1>} : vector<1x128xi32>
    %c128_i32 = arith.constant 128 : i32
    %9 = arith.muli %7, %c128_i32 : i32
    %10 = vector.broadcast %9 : i32 to vector<1x128xi32>
    %11 = arith.addi %10, %8 : vector<1x128xi32>
    %c16_i32 = arith.constant 16 : i32
    %12 = vector.broadcast %c16_i32 : i32 to vector<1x128xi32>
    %13 = arith.cmpi slt, %11, %12 : vector<1x128xi32>
    %14 = arith.extui %13 : vector<1x128xi1> to vector<1x128xi32>
    %15 = arith.sitofp %14 : vector<1x128xi32> to vector<1x128xf32>
    %cst = arith.constant dense<0xFF800000> : vector<128xf32>
    %16 = vector.multi_reduction <maximumf>, %3, %cst [0] : vector<4x128xf32> to vector<128xf32>
    %17 = vector.shape_cast %16 : vector<128xf32> to vector<1x128xf32>
    %18 = vector.broadcast %17 : vector<1x128xf32> to vector<4x128xf32>
    %19 = arith.subf %3, %18 : vector<4x128xf32>
    %20 = math.exp %19 : vector<4x128xf32>
    %cst_6 = arith.constant dense<0.000000e+00> : vector<128xf32>
    %21 = vector.multi_reduction <add>, %20, %cst_6 [0] : vector<4x128xf32> to vector<128xf32>
    %22 = vector.shape_cast %21 : vector<128xf32> to vector<1x128xf32>
    %23 = math.log %22 : vector<1x128xf32>
    %24 = arith.addf %17, %23 : vector<1x128xf32>
    %25 = tpu.iota {dimensions = array<i32: 0>} : vector<4x128xi32>
    %26 = vector.broadcast %4 : vector<1x128xi32> to vector<4x128xi32>
    %27 = arith.cmpi eq, %25, %26 : vector<4x128xi32>
    %cst_7 = arith.constant 0.000000e+00 : f32
    %28 = vector.broadcast %cst_7 : f32 to vector<4x128xf32>
    %29 = arith.select %27, %3, %28 : vector<4x128xi1>, vector<4x128xf32>
    %cst_8 = arith.constant dense<0.000000e+00> : vector<128xf32>
    %30 = vector.multi_reduction <add>, %29, %cst_8 [0] : vector<4x128xf32> to vector<128xf32>
    %31 = vector.shape_cast %30 : vector<128xf32> to vector<1x128xf32>
    %32 = vector.broadcast %5 : vector<1x128xi32> to vector<4x128xi32>
    %33 = arith.cmpi eq, %25, %32 : vector<4x128xi32>
    %cst_9 = arith.constant 0.000000e+00 : f32
    %34 = vector.broadcast %cst_9 : f32 to vector<4x128xf32>
    %35 = arith.select %33, %3, %34 : vector<4x128xi1>, vector<4x128xf32>
    %cst_10 = arith.constant dense<0.000000e+00> : vector<128xf32>
    %36 = vector.multi_reduction <add>, %35, %cst_10 [0] : vector<4x128xf32> to vector<128xf32>
    %37 = vector.shape_cast %36 : vector<128xf32> to vector<1x128xf32>
    %c0_i32_11 = arith.constant 0 : i32
    %38 = vector.broadcast %c0_i32_11 : i32 to vector<1x128xi32>
    %39 = arith.cmpi ne, %4, %38 : vector<1x128xi32>
    %40 = arith.extui %39 : vector<1x128xi1> to vector<1x128xi32>
    %41 = arith.sitofp %40 : vector<1x128xi32> to vector<1x128xf32>
    %42 = arith.mulf %41, %15 : vector<1x128xf32>
    %c0_i32_12 = arith.constant 0 : i32
    %43 = vector.broadcast %c0_i32_12 : i32 to vector<1x128xi32>
    %44 = arith.cmpi eq, %4, %43 : vector<1x128xi32>
    %45 = arith.extui %44 : vector<1x128xi1> to vector<1x128xi32>
    %46 = arith.sitofp %45 : vector<1x128xi32> to vector<1x128xf32>
    %47 = arith.mulf %46, %15 : vector<1x128xf32>
    %48 = arith.subf %24, %31 : vector<1x128xf32>
    %49 = arith.subf %37, %24 : vector<1x128xf32>
    %c0_13 = arith.constant 0 : index
    %c0_14 = arith.constant 0 : index
    %50 = vector.load %arg6[%c0_13, %c0_14] : memref<1x128xf32, #tpu.memory_space<vmem>>, vector<1x128xf32>
    %51 = arith.mulf %48, %42 : vector<1x128xf32>
    %52 = arith.addf %50, %51 : vector<1x128xf32>
    %c0_15 = arith.constant 0 : index
    %c0_16 = arith.constant 0 : index
    %53 = vector.load %arg6[%c0_15, %c0_16] : memref<1x128xf32, #tpu.memory_space<vmem>>, vector<1x128xf32>
    tpu.vector_store %arg6[%c0_15, %c0_16], %52 {strides = array<i32>} : memref<1x128xf32, #tpu.memory_space<vmem>>, vector<1x128xf32>,
    %c0_17 = arith.constant 0 : index
    %c0_18 = arith.constant 0 : index
    %54 = vector.load %arg7[%c0_17, %c0_18] : memref<1x128xf32, #tpu.memory_space<vmem>>, vector<1x128xf32>
    %55 = arith.addf %54, %42 : vector<1x128xf32>
    %c0_19 = arith.constant 0 : index
    %c0_20 = arith.constant 0 : index
    %56 = vector.load %arg7[%c0_19, %c0_20] : memref<1x128xf32, #tpu.memory_space<vmem>>, vector<1x128xf32>
    tpu.vector_store %arg7[%c0_19, %c0_20], %55 {strides = array<i32>} : memref<1x128xf32, #tpu.memory_space<vmem>>, vector<1x128xf32>,
    %c0_21 = arith.constant 0 : index
    %c0_22 = arith.constant 0 : index
    %57 = vector.load %arg8[%c0_21, %c0_22] : memref<1x128xf32, #tpu.memory_space<vmem>>, vector<1x128xf32>
    %58 = arith.mulf %49, %47 : vector<1x128xf32>
    %59 = arith.addf %57, %58 : vector<1x128xf32>
    %c0_23 = arith.constant 0 : index
    %c0_24 = arith.constant 0 : index
    %60 = vector.load %arg8[%c0_23, %c0_24] : memref<1x128xf32, #tpu.memory_space<vmem>>, vector<1x128xf32>
    tpu.vector_store %arg8[%c0_23, %c0_24], %59 {strides = array<i32>} : memref<1x128xf32, #tpu.memory_space<vmem>>, vector<1x128xf32>,
    %c0_i32_25 = arith.constant 0 : i32
    %61 = arith.cmpi eq, %arg1, %c0_i32_25 : i32
    %62 = arith.extui %61 : i1 to i32
    %c0_i32_26 = arith.constant 0 : i32
    %63 = arith.cmpi ne, %62, %c0_i32_26 : i32
    scf.if %63 {
      %c0_27 = arith.constant 0 : index
      %c0_28 = arith.constant 0 : index
      %64 = vector.load %arg6[%c0_27, %c0_28] : memref<1x128xf32, #tpu.memory_space<vmem>>, vector<1x128xf32>
      %65 = vector.shape_cast %64 : vector<1x128xf32> to vector<1x1x128xf32>
      %cst_29 = arith.constant dense<0.000000e+00> : vector<1xf32>
      %66 = vector.multi_reduction <add>, %65, %cst_29 [1, 2] : vector<1x1x128xf32> to vector<1xf32>
      %67 = vector.shape_cast %66 : vector<1xf32> to vector<1x1x1xf32>
      %68 = vector.extract %67[0, 0, 0] : f32 from vector<1x1x1xf32>
      %c0_30 = arith.constant 0 : index
      %c0_31 = arith.constant 0 : index
      %69 = vector.load %arg7[%c0_30, %c0_31] : memref<1x128xf32, #tpu.memory_space<vmem>>, vector<1x128xf32>
      %70 = vector.shape_cast %69 : vector<1x128xf32> to vector<1x1x128xf32>
      %cst_32 = arith.constant dense<0.000000e+00> : vector<1xf32>
      %71 = vector.multi_reduction <add>, %70, %cst_32 [1, 2] : vector<1x1x128xf32> to vector<1xf32>
      %72 = vector.shape_cast %71 : vector<1xf32> to vector<1x1x1xf32>
      %73 = vector.extract %72[0, 0, 0] : f32 from vector<1x1x1xf32>
      %c0_33 = arith.constant 0 : index
      %c0_34 = arith.constant 0 : index
      %74 = vector.load %arg8[%c0_33, %c0_34] : memref<1x128xf32, #tpu.memory_space<vmem>>, vector<1x128xf32>
      %75 = vector.shape_cast %74 : vector<1x128xf32> to vector<1x1x128xf32>
      %cst_35 = arith.constant dense<0.000000e+00> : vector<1xf32>
      %76 = vector.multi_reduction <add>, %75, %cst_35 [1, 2] : vector<1x1x128xf32> to vector<1xf32>
      %77 = vector.shape_cast %76 : vector<1xf32> to vector<1x1x1xf32>
      %78 = vector.extract %77[0, 0, 0] : f32 from vector<1x1x1xf32>
      %79 = tpu.iota {dimensions = array<i32: 1>} : vector<8x128xi32>
      %c0_i32_36 = arith.constant 0 : i32
      %80 = vector.broadcast %c0_i32_36 : i32 to vector<8x128xi32>
      %81 = arith.cmpi eq, %79, %80 : vector<8x128xi32>
      %c1_i32_37 = arith.constant 1 : i32
      %82 = vector.broadcast %c1_i32_37 : i32 to vector<8x128xi32>
      %83 = arith.cmpi eq, %79, %82 : vector<8x128xi32>
      %c2_i32 = arith.constant 2 : i32
      %84 = vector.broadcast %c2_i32 : i32 to vector<8x128xi32>
      %85 = arith.cmpi eq, %79, %84 : vector<8x128xi32>
      %cst_38 = arith.constant 0.000000e+00 : f32
      %86 = vector.broadcast %78 : f32 to vector<8x128xf32>
      %87 = vector.broadcast %cst_38 : f32 to vector<8x128xf32>
      %88 = arith.select %85, %86, %87 : vector<8x128xi1>, vector<8x128xf32>
      %89 = vector.broadcast %73 : f32 to vector<8x128xf32>
      %90 = arith.select %83, %89, %88 : vector<8x128xi1>, vector<8x128xf32>
      %91 = vector.broadcast %68 : f32 to vector<8x128xf32>
      %92 = arith.select %81, %91, %90 : vector<8x128xi1>, vector<8x128xf32>
      %c0_39 = arith.constant 0 : index
      %c0_40 = arith.constant 0 : index
      %93 = vector.load %arg5[%c0_39, %c0_40] : memref<8x128xf32, #tpu.memory_space<vmem>>, vector<8x128xf32>
      tpu.vector_store %arg5[%c0_39, %c0_40], %92 {strides = array<i32>} : memref<8x128xf32, #tpu.memory_space<vmem>>, vector<8x128xf32>,
    } else {
    }
    return
  }
  func.func @transform_0(%arg0: i32, %arg1: i32) -> (i32, i32) {
    %c1_i32 = arith.constant 1 : i32
    %0 = arith.muli %arg0, %c1_i32 : i32
    %1 = arith.addi %0, %arg1 : i32
    %c0_i32 = arith.constant 0 : i32
    %c0_i32_0 = arith.constant 0 : i32
    return %c0_i32, %1 : i32, i32
  }
  func.func @transform_1(%arg0: i32, %arg1: i32) -> (i32, i32) {
    %c1_i32 = arith.constant 1 : i32
    %0 = arith.muli %arg0, %c1_i32 : i32
    %1 = arith.addi %0, %arg1 : i32
    %c0_i32 = arith.constant 0 : i32
    %c0_i32_0 = arith.constant 0 : i32
    return %c0_i32, %1 : i32, i32
  }
  func.func @transform_2(%arg0: i32, %arg1: i32) -> (i32, i32) {
    %c1_i32 = arith.constant 1 : i32
    %0 = arith.muli %arg0, %c1_i32 : i32
    %1 = arith.addi %0, %arg1 : i32
    %c0_i32 = arith.constant 0 : i32
    %c0_i32_0 = arith.constant 0 : i32
    return %c0_i32, %1 : i32, i32
  }
  func.func @transform_3(%arg0: i32, %arg1: i32) -> (i32, i32) {
    %c0_i32 = arith.constant 0 : i32
    %c0_i32_0 = arith.constant 0 : i32
    return %arg0, %c0_i32 : i32, i32
  }
}

</mosaic_0001>

<llo_original>
// kernel: tpu_custom_call.1
$region0: #{tpu_custom_call.1}
  #allocation0 [shape = 'u32[]', space=smem, size = 0x4, offset = 0x4, fixed_abs, tag = 'smem constant byte address 0x4 - core index']
  #allocation1 [shape = 'u32[144,128]{1,0:T(1,128)}', space=vmem, size = 0x12000, scoped, tag = 'internal scratch']
  #allocation2 [shape = 'f32[1,128]{1,0:T(1,128)}', space=vmem, size = 0x200, scoped, tag = 'scratch operand']
  #allocation3 [shape = 'f32[1,128]{1,0:T(1,128)}', space=vmem, size = 0x200, scoped, tag = 'scratch operand']
  #allocation4 [shape = 'f32[1,128]{1,0:T(1,128)}', space=vmem, size = 0x200, scoped, tag = 'scratch operand']
  %s0 = inlined_call_operand.hbm [shape: f32[4,256], index: 0, kind: input, shape index: {}]
  %s1 = inlined_call_operand.vmem [shape: s32[1,256], index: 1, kind: input, shape index: {}]
  %s2 = inlined_call_operand.vmem [shape: s32[1,256], index: 2, kind: input, shape index: {}]
  %s3 = inlined_call_operand.hbm [shape: f32[16,128], index: 3, kind: output, shape index: {}]
  %s4 = sld [smem:[#allocation0]]
  $region57: #{tpu_custom_call.1} parent=0
    _
  %s6 = ssub.s32 1, %s4
  %s7 = scalar_select 0, %s6, %s4
  $region1: #{tpu_custom_call.1} parent=0
    #allocation5 [shape = 'u8[4096]{0}', space=vmem, size = 0x1000, scoped, tag = 'input window, operand 0']
    #allocation6 [shape = 's32[2]{0}', space=sflag, size = 0x8, scoped, tag = 'scoped memory for tpu_custom_call.1']
    #allocation7 [shape = 's32[2]{0}', space=sflag, size = 0x8, scoped, tag = 'scoped memory for tpu_custom_call.1']
    #allocation8 [shape = 'u8[8192]{0}', space=vmem, size = 0x2000, scoped, tag = 'output window, operand 0']
    %8 = vsyncpa [#allocation6], 0
    %s9 = scalar_lea.sflag [#allocation6], 1
    %10 = vsyncpa %s9, 0
    %11 = vsyncpa [#allocation7], 0
    %s12 = scalar_lea.sflag [#allocation7], 1
    %13 = vsyncpa %s12, 0
    loop: start=0, step=1, limit=4
    $region2: #{tpu_custom_call.1} parent=1 // loop_pre_header
      _
    $region3: #{tpu_custom_call.1} parent=1 // loop_header
      %s15 = sphi 0, %s19
      %p16 = scmp.ge.s32.totalorder %s15, 4
      %s22 = sphi 0, %s34
      %s23 = sphi 0, %s30
      %s24 = sphi 0, %s22
      %s25 = sphi 0, %s23
      %s26 = sphi 0, %s24
      %s27 = sphi 0, %s25
      %s39 = sphi 0, %s41
      %s42 = sphi 0, %s39
      %s43 = sphi 0, %s42
      %s59 = sphi 0, %s43
      %s67 = sphi 0, %s69
      %s70 = sphi 0, %s67
      %s71 = sphi 0, %s70
      %s87 = sphi 0, %s71
      %s95 = sphi 0, %s97
      %s98 = sphi 0, %s95
      %s99 = sphi 0, %s98
      %s115 = sphi 0, %s99
      %s121 = sphi 0, %s123
      %s124 = sphi 0, %s121
      %s125 = sphi 0, %s124
      %s141 = sphi 0, %s125
    $region4: #{tpu_custom_call.1} parent=1 // loop_header_branch
      %18 = sbr.rel (%p16) target = $region8
    $region5: #{tpu_custom_call.1} parent=1 // loop_body
      %s20 = ssub.s32 %s15, 1
      %s21 = ssub.s32 %s15, 2
      %s28 = sadd.s32 1, %s23
      %p29 = scmp.ge.s32.totalorder %s28, 1
      %s30 = scalar_select %p29, 0, %s28
      %s31 = sadd.s32 1, %s22
      %s32 = scalar_select %p29, %s31, %s22
      %p33 = scmp.ge.s32.totalorder %s32, 2
      %s34 = scalar_select %p33, 0, %s32
      %s35 = sadd.s32 %s22, %s23
      %s36 = sadd.s32 %s34, %s30
      %s37 = ssub.s32 %s35, %s36
      %p38 = scmp.eq.s32.totalorder %s37, 0
      %s40 = sadd.s32 %s39, 1
      %s41 = scalar_select %p38, %s39, %s40
      %p44 = pneg %p38
      %p45 = scmp.eq.s32.totalorder %s15, 1
      %p46 = por %p44, %p45
      %p47 = scmp.ne.s32.totalorder %s39, %s42
      %p48 = scmp.eq.s32.totalorder %s15, 0
      %p49 = por %p47, %p48
      %p50 = scmp.ne.s32.totalorder %s39, %s42
      %p51 = scmp.eq.s32.totalorder %s20, 1
      %p52 = por %p50, %p51
      %p53 = scmp.ne.s32.totalorder %s42, %s43
      %p54 = scmp.eq.s32.totalorder %s20, 0
      %p55 = por %p53, %p54
      %p56 = scmp.ne.s32.totalorder %s42, %s43
      %p57 = scmp.eq.s32.totalorder %s21, 1
      %p58 = por %p56, %p57
      %p60 = scmp.ne.s32.totalorder %s43, %s59
      %p61 = scmp.eq.s32.totalorder %s21, 0
      %p62 = por %p60, %p61
      %s63 = sadd.s32 %s22, %s23
      %s64 = sadd.s32 %s34, %s30
      %s65 = ssub.s32 %s63, %s64
      %p66 = scmp.eq.s32.totalorder %s65, 0
      %s68 = sadd.s32 %s67, 1
      %s69 = scalar_select %p66, %s67, %s68
      %p72 = pneg %p66
      %p73 = scmp.eq.s32.totalorder %s15, 1
      %p74 = por %p72, %p73
      %p75 = scmp.ne.s32.totalorder %s67, %s70
      %p76 = scmp.eq.s32.totalorder %s15, 0
      %p77 = por %p75, %p76
      %p78 = scmp.ne.s32.totalorder %s67, %s70
      %p79 = scmp.eq.s32.totalorder %s20, 1
      %p80 = por %p78, %p79
      %p81 = scmp.ne.s32.totalorder %s70, %s71
      %p82 = scmp.eq.s32.totalorder %s20, 0
      %p83 = por %p81, %p82
      %p84 = scmp.ne.s32.totalorder %s70, %s71
      %p85 = scmp.eq.s32.totalorder %s21, 1
      %p86 = por %p84, %p85
      %p88 = scmp.ne.s32.totalorder %s71, %s87
      %p89 = scmp.eq.s32.totalorder %s21, 0
      %p90 = por %p88, %p89
      %s91 = sadd.s32 %s22, %s23
      %s92 = sadd.s32 %s34, %s30
      %s93 = ssub.s32 %s91, %s92
      %p94 = scmp.eq.s32.totalorder %s93, 0
      %s96 = sadd.s32 %s95, 1
      %s97 = scalar_select %p94, %s95, %s96
      %p100 = pneg %p94
      %p101 = scmp.eq.s32.totalorder %s15, 1
      %p102 = por %p100, %p101
      %p103 = scmp.ne.s32.totalorder %s95, %s98
      %p104 = scmp.eq.s32.totalorder %s15, 0
      %p105 = por %p103, %p104
      %p106 = scmp.ne.s32.totalorder %s95, %s98
      %p107 = scmp.eq.s32.totalorder %s20, 1
      %p108 = por %p106, %p107
      %p109 = scmp.ne.s32.totalorder %s98, %s99
      %p110 = scmp.eq.s32.totalorder %s20, 0
      %p111 = por %p109, %p110
      %p112 = scmp.ne.s32.totalorder %s98, %s99
      %p113 = scmp.eq.s32.totalorder %s21, 1
      %p114 = por %p112, %p113
      %p116 = scmp.ne.s32.totalorder %s99, %s115
      %p117 = scmp.eq.s32.totalorder %s21, 0
      %p118 = por %p116, %p117
      %s119 = ssub.s32 %s22, %s34
      %p120 = scmp.eq.s32.totalorder %s119, 0
      %s122 = sadd.s32 %s121, 1
      %s123 = scalar_select %p120, %s121, %s122
      %p126 = pneg %p120
      %p127 = scmp.eq.s32.totalorder %s15, 1
      %p128 = por %p126, %p127
      %p129 = scmp.ne.s32.totalorder %s121, %s124
      %p130 = scmp.eq.s32.totalorder %s15, 0
      %p131 = por %p129, %p130
      %p132 = scmp.ne.s32.totalorder %s121, %s124
      %p133 = scmp.eq.s32.totalorder %s20, 1
      %p134 = por %p132, %p133
      %p135 = scmp.ne.s32.totalorder %s124, %s125
      %p136 = scmp.eq.s32.totalorder %s20, 0
      %p137 = por %p135, %p136
      %p138 = scmp.ne.s32.totalorder %s124, %s125
      %p139 = scmp.eq.s32.totalorder %s21, 1
      %p140 = por %p138, %p139
      %p142 = scmp.ne.s32.totalorder %s125, %s141
      %p143 = scmp.eq.s32.totalorder %s21, 0
      %p144 = por %p142, %p143
      %p145 = scmp.le.s32.totalorder 1, %s15
      %p146 = scmp.lt.s32.totalorder %s15, 3
      %p147 = pnand %p145, %p146
      %p148 = pneg %p147
      // Predicated region
      $region9: #{tpu_custom_call.1} parent=5 // pred_check
        _
      $region10: #{tpu_custom_call.1} parent=5 // pred_check_branch
        %150 = sbr.rel (%p147) target = $region12
      $region11: #{tpu_custom_call.1} parent=5 // pred_region
        %s151 = ssub.s32 %s15, 1
      $region12: #{tpu_custom_call.1} parent=5 // pred_fallthru
        _
      %p152 = scmp.lt.s32.totalorder %s15, 2
      // Predicated region
      $region13: #{tpu_custom_call.1} parent=5 // pred_check
        %p153 = pneg %p152
      $region14: #{tpu_custom_call.1} parent=5 // pred_check_branch
        %155 = sbr.rel (%p153) target = $region16
      $region15: #{tpu_custom_call.1} parent=5 // pred_region
        // Predicated region
        $region17: #{tpu_custom_call.1} parent=15 // pred_check
          %p156 = pneg %p49
        $region18: #{tpu_custom_call.1} parent=15 // pred_check_branch
          %158 = sbr.rel (%p156) target = $region20
        $region19: #{tpu_custom_call.1} parent=15 // pred_region
          %s159 = sand.u32 %s39, 1
          %s160 = scalar_lea.sflag [#allocation6], %s159
          %s161 = sand.u32 %s39, 1
          %s162 = smul.addr %s161, 4
          %s163 = scalar_lea.vmem [#allocation5], %s162
          %s164 = sadd.s32 %s22, %s23
          %s166 = ssub.s32 64, 64
          %167 = vsyncadd %s160, %s166
          %s168 = smul.addr %s164, 64
          %s169 = scalar_lea.hbm %s0, %s168
          %s171 = sshll.u32 %s163, 4
          %s172 = int_to_ptr.vmem [resolvable:$true] %s171
          %174 = dma.hbm_to_vmem [thread:$0]  %s169, 64, %s172, %s160
        $region20: #{tpu_custom_call.1} parent=15 // pred_fallthru
          _
        // Predicated region
        $region21: #{tpu_custom_call.1} parent=15 // pred_check
          %p175 = pneg %p77
        $region22: #{tpu_custom_call.1} parent=15 // pred_check_branch
          %177 = sbr.rel (%p175) target = $region24
        $region23: #{tpu_custom_call.1} parent=15 // pred_region
          %s178 = sadd.s32 %s22, %s23
          %p179 = scmp.lt.s32.totalorder %s178, 1
          %s180 = scalar_select %p179, %s178, 1
          %s181 = scalar_lea.vmem %s1, %s180
          %s182 = sadd.s32 %s22, %s23
        $region24: #{tpu_custom_call.1} parent=15 // pred_fallthru
          _
        // Predicated region
        $region25: #{tpu_custom_call.1} parent=15 // pred_check
          %p183 = pneg %p105
        $region26: #{tpu_custom_call.1} parent=15 // pred_check_branch
          %185 = sbr.rel (%p183) target = $region28
        $region27: #{tpu_custom_call.1} parent=15 // pred_region
          %s186 = sadd.s32 %s22, %s23
          %p187 = scmp.lt.s32.totalorder %s186, 1
          %s188 = scalar_select %p187, %s186, 1
          %s189 = scalar_lea.vmem %s2, %s188
          %s190 = sadd.s32 %s22, %s23
        $region28: #{tpu_custom_call.1} parent=15 // pred_fallthru
          _
      $region16: #{tpu_custom_call.1} parent=5 // pred_fallthru
        _
      %p191 = scmp.le.s32.totalorder 1, %s15
      %p192 = scmp.lt.s32.totalorder %s15, 3
      %p193 = pnand %p191, %p192
      %p194 = pneg %p193
      // Predicated region
      $region29: #{tpu_custom_call.1} parent=5 // pred_check
        _
      $region30: #{tpu_custom_call.1} parent=5 // pred_check_branch
        %196 = sbr.rel (%p193) target = $region32
      $region31: #{tpu_custom_call.1} parent=5 // pred_region
        %s197 = ssub.s32 %s15, 1
        %s198 = sand.u32 %s42, 1
        %s199 = scalar_lea.sflag [#allocation6], %s198
        %s200 = sand.u32 %s42, 1
        %s201 = smul.addr %s200, 4
        %s202 = scalar_lea.vmem [#allocation5], %s201
        // Predicated region
        $region33: #{tpu_custom_call.1} parent=31 // pred_check
          %p203 = pneg %p55
        $region34: #{tpu_custom_call.1} parent=31 // pred_check_branch
          %205 = sbr.rel (%p203) target = $region36
        $region35: #{tpu_custom_call.1} parent=31 // pred_region
          %206 = dma.done %s199, 64
        $region36: #{tpu_custom_call.1} parent=31 // pred_fallthru
          _
        %s207 = sand.u32 %s42, 1
        %s208 = scalar_lea.sflag [#allocation6], %s207
        %s209 = sand.u32 %s42, 1
        %s210 = smul.addr %s209, 4
        %s211 = scalar_lea.vmem [#allocation5], %s210
        %p212 = pneg %p55
        %p213 = pneg %p52
        %s214 = sadd.s32 %s24, %s25
        %p215 = scmp.lt.s32.totalorder %s214, 1
        %s216 = scalar_select %p215, %s214, 1
        %s217 = scalar_lea.vmem %s1, %s216
        %p218 = pneg %p83
        %p219 = pneg %p80
        %s220 = sadd.s32 %s24, %s25
        %p221 = scmp.lt.s32.totalorder %s220, 1
        %s222 = scalar_select %p221, %s220, 1
        %s223 = scalar_lea.vmem %s2, %s222
        %p224 = pneg %p111
        %p225 = pneg %p108
        %p226 = pneg %p137
        %p227 = pneg %p134
        %s228 = sand.u32 %s124, 1
        %s229 = scalar_lea.sflag [#allocation7], %s228
        %s230 = sand.u32 %s124, 1
        %s231 = smul.addr %s230, 8
        %s232 = scalar_lea.vmem [#allocation8], %s231
        %s233 = sadd.s32 %s24, %s25
        %s234 = sadd.s32 %s24, %s25
        %p235 = scmp.lt.s32.totalorder %s234, 1
        %s236 = scalar_select %p235, %s234, 1
        %s237 = scalar_lea.vmem %s1, %s236
        %s238 = sadd.s32 %s24, %s25
        %s239 = sadd.s32 %s24, %s25
        %p240 = scmp.lt.s32.totalorder %s239, 1
        %s241 = scalar_select %p240, %s239, 1
        %s242 = scalar_lea.vmem %s2, %s241
        %s243 = sadd.s32 %s24, %s25
        %p244 = scmp.eq.s32.totalorder %s25, 0
        // Predicated region
        $region37: #{tpu_custom_call.1} parent=31 // pred_check
          %p245 = pneg %p244
        $region38: #{tpu_custom_call.1} parent=31 // pred_check_branch
          %247 = sbr.rel (%p245) target = $region40
        $region39: #{tpu_custom_call.1} parent=31 // pred_region
          %248 = vst [vmem:[#allocation2] sm:$0x1] 0.0
          %249 = vst [vmem:[#allocation3] sm:$0x1] 0.0
          %250 = vst [vmem:[#allocation4] sm:$0x1] 0.0
        $region40: #{tpu_custom_call.1} parent=31 // pred_fallthru
          _
        %v251 = vld [vmem:[%s202] sm:$0xf]
        %v252 = vld [vmem:[%s237] sm:$0x1]
        %v253 = vld [vmem:[%s242] sm:$0x1]
        %s254 = sadd.s32 %s24, %s25
        %v255 = vlaneseq
        %v256 = vand.u32 %v255, 127
        %s257 = smul.u32 %s254, 128
        %v258 = vstv %s257
        %v259 = vadd.s32 %v258, %v256
        %vm260 = vcmp.lt.s32.totalorder %v259, 16
        %v261 = vsel %vm260, 1, 0
        %v262 = vcvt.s32.f32 %v261
        %vm263 = vcmask 1043456
        %v264 = vsel %vm263, %v251, -inf
        %v265 = vrot.slane %v264, 4
        %v266 = vmax.f32 %v264, %v265
        %v267 = vrot.slane %v266, 2
        %v268 = vmax.f32 %v266, %v267
        %v269 = vrot.slane %v268, 1
        %v270 = vmax.f32 %v268, %v269
        %v271 = vsub.f32 %v251, %v270
        %v272 = vmul.f32 %v271, 1.442695
        %v273 = vpow.pop %v272
        %v274 = vsel %vm263, %v273, 0.0
        %v275 = vrot.slane %v274, 4
        %v276 = vadd.f32 %v274, %v275
        %v277 = vrot.slane %v276, 2
        %v278 = vadd.f32 %v276, %v277
        %v279 = vrot.slane %v278, 1
        %v280 = vadd.f32 %v278, %v279
        %v281 = vlog2.pop %v280
        %v282 = vmul.f32 %v281, 0.6931472
        %v283 = vadd.f32 %v270, %v282
        %v284 = vlaneseq
        %v285 = vshrl.u32 %v284, 7
        %v286 = vlaneseq
        %v287 = vshrl.u32 %v286, 7
        %v288 = vsub.s32 0, %v287
        %v289 = vrot.slane %v252, %v288
        %vm290 = vcmp.eq.s32.totalorder %v285, %v289
        %v291 = vsel %vm290, %v251, 0.0
        %v292 = vsel %vm263, %v291, 0.0
        %v293 = vrot.slane %v292, 4
        %v294 = vadd.f32 %v292, %v293
        %v295 = vrot.slane %v294, 2
        %v296 = vadd.f32 %v294, %v295
        %v297 = vrot.slane %v296, 1
        %v298 = vadd.f32 %v296, %v297
        %v299 = vlaneseq
        %v300 = vshrl.u32 %v299, 7
        %v301 = vsub.s32 0, %v300
        %v302 = vrot.slane %v253, %v301
        %vm303 = vcmp.eq.s32.totalorder %v285, %v302
        %v304 = vsel %vm303, %v251, 0.0
        %v305 = vsel %vm263, %v304, 0.0
        %v306 = vrot.slane %v305, 4
        %v307 = vadd.f32 %v305, %v306
        %v308 = vrot.slane %v307, 2
        %v309 = vadd.f32 %v307, %v308
        %v310 = vrot.slane %v309, 1
        %v311 = vadd.f32 %v309, %v310
        %vm312 = vcmp.ne.s32.totalorder %v252, 0
        %v313 = vsel %vm312, 1, 0
        %v314 = vcvt.s32.f32 %v313
        %v315 = vmul.f32 %v314, %v262
        %vm316 = vcmp.eq.s32.totalorder %v252, 0
        %v317 = vsel %vm316, 1, 0
        %v318 = vcvt.s32.f32 %v317
        %v319 = vmul.f32 %v318, %v262
        %v320 = vsub.f32 %v283, %v298
        %v321 = vsub.f32 %v311, %v283
        %v322 = vld [vmem:[#allocation2] sm:$0x1]
        %v323 = vmul.f32 %v320, %v315
        %v324 = vadd.f32 %v322, %v323
        %325 = vst [vmem:[#allocation2] sm:$0x1] %v324
        %v326 = vld [vmem:[#allocation3] sm:$0x1]
        %v327 = vadd.f32 %v326, %v315
        %328 = vst [vmem:[#allocation3] sm:$0x1] %v327
        %v329 = vld [vmem:[#allocation4] sm:$0x1]
        %v330 = vmul.f32 %v321, %v319
        %v331 = vadd.f32 %v329, %v330
        %332 = vst [vmem:[#allocation4] sm:$0x1] %v331
        // Predicated region
        $region41: #{tpu_custom_call.1} parent=31 // pred_check
          %p333 = pneg %p244
        $region42: #{tpu_custom_call.1} parent=31 // pred_check_branch
          %335 = sbr.rel (%p333) target = $region44
        $region43: #{tpu_custom_call.1} parent=31 // pred_region
          %v336 = vld [vmem:[#allocation2] sm:$0x1]
          %vm337 = vcmask 1040384
          %v338 = vsel %vm337, %v336, 0.0
          %339 = vadd.xlane.f32.xlu0 %v338
          %v340 = vpop.xlane.xlu0 %339
          %v341 = vrot.slane %v340, 4
          %v342 = vadd.f32 %v340, %v341
          %v343 = vrot.slane %v342, 2
          %v344 = vadd.f32 %v342, %v343
          %v345 = vrot.slane %v344, 1
          %v346 = vadd.f32 %v344, %v345
          %s347 = vtos %v346
          %v348 = vld [vmem:[#allocation3] sm:$0x1]
          %v349 = vsel %vm337, %v348, 0.0
          %350 = vadd.xlane.f32.xlu0 %v349
          %v351 = vpop.xlane.xlu0 %350
          %v352 = vrot.slane %v351, 4
          %v353 = vadd.f32 %v351, %v352
          %v354 = vrot.slane %v353, 2
          %v355 = vadd.f32 %v353, %v354
          %v356 = vrot.slane %v355, 1
          %v357 = vadd.f32 %v355, %v356
          %s358 = vtos %v357
          %v359 = vld [vmem:[#allocation4] sm:$0x1]
          %v360 = vsel %vm337, %v359, 0.0
          %361 = vadd.xlane.f32.xlu0 %v360
          %v362 = vpop.xlane.xlu0 %361
          %v363 = vrot.slane %v362, 4
          %v364 = vadd.f32 %v362, %v363
          %v365 = vrot.slane %v364, 2
          %v366 = vadd.f32 %v364, %v365
          %v367 = vrot.slane %v366, 1
          %v368 = vadd.f32 %v366, %v367
          %s369 = vtos %v368
          %vm370 = vcmp.eq.s32.totalorder %v256, 0
          %vm371 = vcmp.eq.s32.totalorder %v256, 1
          %vm372 = vcmp.eq.s32.totalorder %v256, 2
          %v373 = vstv %s369
          %v374 = vsel %vm372, %v373, 0.0
          %v375 = vstv %s358
          %v376 = vsel %vm371, %v375, %v374
          %v377 = vstv %s347
          %v378 = vsel %vm370, %v377, %v376
          %379 = vst [vmem:[%s232] sm:$0xff] %v378
        $region44: #{tpu_custom_call.1} parent=31 // pred_fallthru
          _
        %s380 = sand.u32 %s124, 1
        %s381 = scalar_lea.sflag [#allocation7], %s380
        %s382 = sand.u32 %s124, 1
        %s383 = smul.addr %s382, 8
        %s384 = scalar_lea.vmem [#allocation8], %s383
        // Predicated region
        $region45: #{tpu_custom_call.1} parent=31 // pred_check
          %p385 = pneg %p134
        $region46: #{tpu_custom_call.1} parent=31 // pred_check_branch
          %387 = sbr.rel (%p385) target = $region48
        $region47: #{tpu_custom_call.1} parent=31 // pred_region
          %s389 = ssub.s32 128, 128
          %390 = vsyncadd %s381, %s389
          %s391 = smul.addr %s24, 128
          %s392 = scalar_lea.hbm %s3, %s391
          %s394 = sshll.u32 %s384, 4
          %s395 = int_to_ptr.vmem [resolvable:$true] %s394
          %397 = dma.vmem_to_hbm [thread:$0]  %s395, 128, %s392, %s381
        $region48: #{tpu_custom_call.1} parent=31 // pred_fallthru
          _
      $region32: #{tpu_custom_call.1} parent=5 // pred_fallthru
        _
      %p398 = scmp.le.s32.totalorder 2, %s15
      // Predicated region
      $region49: #{tpu_custom_call.1} parent=5 // pred_check
        %p399 = pneg %p398
      $region50: #{tpu_custom_call.1} parent=5 // pred_check_branch
        %401 = sbr.rel (%p399) target = $region52
      $region51: #{tpu_custom_call.1} parent=5 // pred_region
        %s402 = ssub.s32 %s15, 2
        // Predicated region
        $region53: #{tpu_custom_call.1} parent=51 // pred_check
          %p403 = pneg %p140
        $region54: #{tpu_custom_call.1} parent=51 // pred_check_branch
          %405 = sbr.rel (%p403) target = $region56
        $region55: #{tpu_custom_call.1} parent=51 // pred_region
          %s406 = sand.u32 %s125, 1
          %s407 = scalar_lea.sflag [#allocation7], %s406
          %s408 = sand.u32 %s125, 1
          %s409 = smul.addr %s408, 8
          %s410 = scalar_lea.vmem [#allocation8], %s409
          %411 = dma.done %s407, 128
        $region56: #{tpu_custom_call.1} parent=51 // pred_fallthru
          _
      $region52: #{tpu_custom_call.1} parent=5 // pred_fallthru
        _
    $region6: #{tpu_custom_call.1} parent=1 // loop_footer
      %s19 = sadd.s32 1, %s15
    $region7: #{tpu_custom_call.1} parent=1 // loop_footer_branch
      %14 = sbr.rel target = $region3
    $region8: #{tpu_custom_call.1} parent=1 // loop_exit
      _
    %412 = vsyncpa [#allocation6], 1
    %s413 = scalar_lea.sflag [#allocation6], 1
    %414 = vsyncpa %s413, 1
    %415 = vsyncpa [#allocation7], 1
    %s416 = scalar_lea.sflag [#allocation7], 1
    %417 = vsyncpa %s416, 1

</llo_original>
